<compile_context>
chip_gen: v6e
topology: v6e:2x2x1
jax: 0.10.0
libtpu: 0.0.40
codegen_flags: <defaults>
</compile_context>

<pallas_src>
import jax
import jax.numpy as jnp
from jax.experimental import pallas as pl
from jax.experimental.pallas import tpu as pltpu


def _concat_channels_kernel(a_ref, b_ref, o_ref):
    # a_ref: (B, C1*H*W), b_ref: (B, C2*H*W), o_ref: (B, (C1+C2)*H*W), all VMEM.
    split = a_ref.shape[1]          # static Python int -> static, 128-aligned slices
    o_ref[:, :split] = a_ref[...]
    o_ref[:, split:] = b_ref[...]


def addcoords_forward(input_tensor, match_tensor):
    """AddCoords.forward: concat([input_tensor, match_tensor], dim=1), NCHW."""
    assert input_tensor.dtype == match_tensor.dtype
    B, C1, H, W = input_tensor.shape
    B2, C2, H2, W2 = match_tensor.shape
    assert (B, H, W) == (B2, H2, W2)

    # Lane-dense flattened views (free reshape for contiguous NCHW); the concat
    # boundary C1*H*W (= 1024 here) is a multiple of 128 -> unmasked stores.
    a_w = C1 * H * W
    b_w = C2 * H * W
    o_w = a_w + b_w
    a2d = input_tensor.reshape(B, a_w)
    b2d = match_tensor.reshape(B, b_w)

    out2d = pl.pallas_call(
        _concat_channels_kernel,
        out_shape=jax.ShapeDtypeStruct((B, o_w), input_tensor.dtype),
        grid=(1,),
        in_specs=[
            pl.BlockSpec((B, a_w), lambda i: (0, 0)),
            pl.BlockSpec((B, b_w), lambda i: (0, 0)),
        ],
        out_specs=pl.BlockSpec((B, o_w), lambda i: (0, 0)),
        compiler_params=pltpu.CompilerParams(
            dimension_semantics=("arbitrary",),
        ),
    )(a2d, b2d)

    return out2d.reshape(B, C1 + C2, H, W)


if __name__ == "__main__":
    key = jax.random.PRNGKey(0)
    k_in, k_match = jax.random.split(key)

    # Small NCHW shapes consistent with the module: concat 4 + 2 channels
    # over a 16x16 spatial grid.
    B, C1, C2, H, W = 2, 4, 2, 16, 16
    input_tensor = jax.random.normal(k_in, (B, C1, H, W), jnp.float32)
    match_tensor = jax.random.normal(k_match, (B, C2, H, W), jnp.float32)

    out = addcoords_forward(input_tensor, match_tensor)
    out = jax.block_until_ready(out)

    # Correctness check against plain-JAX reference of torch.cat(dim=1).
    ref = jnp.concatenate([input_tensor, match_tensor], axis=1)
    assert out.shape == (B, C1 + C2, H, W), out.shape
    assert jnp.array_equal(out, ref), "kernel output mismatch"

    print("KERNEL_OK")
</pallas_src>

<mosaic_0001>
module attributes {stable_mosaic.version = 11 : i64} {
  func.func @_concat_channels_kernel(%arg0: i32, %arg1: memref<2x1024xf32, #tpu.memory_space<vmem>>, %arg2: memref<2x512xf32, #tpu.memory_space<vmem>>, %arg3: memref<2x1536xf32, #tpu.memory_space<vmem>>) attributes {dimension_semantics = [#tpu.dimension_semantics<arbitrary>], iteration_bounds = array<i64: 1>, scalar_prefetch = 0 : i64, scratch_operands = 0 : i64, tpu.core_type = #tpu.core_type<tc>, window_params = [{pipeline_mode = #tpu.pipeline_mode<synchronous>, transform_indices = @transform_0, window_bounds = array<i64: 2, 1024>}, {pipeline_mode = #tpu.pipeline_mode<synchronous>, transform_indices = @transform_1, window_bounds = array<i64: 2, 512>}, {pipeline_mode = #tpu.pipeline_mode<synchronous>, transform_indices = @transform_2, window_bounds = array<i64: 2, 1536>}]} {
    %c0 = arith.constant 0 : index
    %c0_0 = arith.constant 0 : index
    %0 = vector.load %arg1[%c0, %c0_0] : memref<2x1024xf32, #tpu.memory_space<vmem>>, vector<2x1024xf32>
    %c0_1 = arith.constant 0 : index
    %c0_2 = arith.constant 0 : index
    %1 = vector.load %arg3[%c0_1, %c0_2] : memref<2x1536xf32, #tpu.memory_space<vmem>>, vector<2x1024xf32>
    tpu.vector_store %arg3[%c0_1, %c0_2], %0 {strides = array<i32>} : memref<2x1536xf32, #tpu.memory_space<vmem>>, vector<2x1024xf32>,
    %c0_3 = arith.constant 0 : index
    %c0_4 = arith.constant 0 : index
    %2 = vector.load %arg2[%c0_3, %c0_4] : memref<2x512xf32, #tpu.memory_space<vmem>>, vector<2x512xf32>
    %c0_5 = arith.constant 0 : index
    %c1024 = arith.constant 1024 : index
    %3 = vector.load %arg3[%c0_5, %c1024] : memref<2x1536xf32, #tpu.memory_space<vmem>>, vector<2x512xf32>
    tpu.vector_store %arg3[%c0_5, %c1024], %2 {strides = array<i32>} : memref<2x1536xf32, #tpu.memory_space<vmem>>, vector<2x512xf32>,
    return
  }
  func.func @transform_0(%arg0: i32) -> (i32, i32) {
    %c0_i32 = arith.constant 0 : i32
    %c0_i32_0 = arith.constant 0 : i32
    %c0_i32_1 = arith.constant 0 : i32
    return %c0_i32, %c0_i32_0 : i32, i32
  }
  func.func @transform_1(%arg0: i32) -> (i32, i32) {
    %c0_i32 = arith.constant 0 : i32
    %c0_i32_0 = arith.constant 0 : i32
    %c0_i32_1 = arith.constant 0 : i32
    return %c0_i32, %c0_i32_0 : i32, i32
  }
  func.func @transform_2(%arg0: i32) -> (i32, i32) {
    %c0_i32 = arith.constant 0 : i32
    %c0_i32_0 = arith.constant 0 : i32
    %c0_i32_1 = arith.constant 0 : i32
    return %c0_i32, %c0_i32_0 : i32, i32
  }
}

</mosaic_0001>

<llo_original>
// kernel: tpu_custom_call.1
$region0: #{tpu_custom_call.1}
  #allocation0 [shape = 'u32[]', space=smem, size = 0x4, offset = 0x4, fixed_abs, tag = 'smem constant byte address 0x4 - core index']
  #allocation1 [shape = 'u32[144,128]{1,0:T(1,128)}', space=vmem, size = 0x12000, scoped, tag = 'internal scratch']
  %s0 = inlined_call_operand.hbm [shape: f32[2,1024], index: 0, kind: input, shape index: {}]
  %s1 = inlined_call_operand.hbm [shape: f32[2,512], index: 1, kind: input, shape index: {}]
  %s2 = inlined_call_operand.hbm [shape: f32[2,1536], index: 2, kind: output, shape index: {}]
  %s3 = sld [smem:[#allocation0]]
  $region26: #{tpu_custom_call.1} parent=0
    _
  %s5 = ssub.s32 1, %s3
  %s6 = scalar_select 0, %s5, %s3
  $region1: #{tpu_custom_call.1} parent=0
    #allocation2 [shape = 'u8[8192]{0}', space=vmem, size = 0x2000, scoped, tag = 'input window, operand 0, single buffered']
    #allocation3 [shape = 's32[1]{0}', space=sflag, size = 0x4, scoped, tag = 'scoped memory for tpu_custom_call.1']
    #allocation4 [shape = 's32[1]{0}', space=sflag, size = 0x4, scoped, tag = 'scoped memory for tpu_custom_call.1']
    #allocation5 [shape = 'u8[4096]{0}', space=vmem, size = 0x1000, scoped, tag = 'input window, operand 1, single buffered']
    #allocation6 [shape = 's32[1]{0}', space=sflag, size = 0x4, scoped, tag = 'scoped memory for tpu_custom_call.1']
    #allocation7 [shape = 'u8[12288]{0}', space=vmem, size = 0x3000, scoped, tag = 'output window, operand 0, single buffered']
    %7 = vsyncpa [#allocation3], 0
    %8 = vsyncpa [#allocation6], 0
    %9 = vsyncpa [#allocation4], 0
    // Predicated region
    $region2: #{tpu_custom_call.1} parent=1 // pred_check
      _
    $region3: #{tpu_custom_call.1} parent=1 // pred_check_branch
      %11 = sbr.rel (0) target = $region5
    $region4: #{tpu_custom_call.1} parent=1 // pred_region
      %s13 = ssub.s32 256, 256
      %14 = vsyncadd [#allocation3], %s13
      %s16 = sshll.u32 [#allocation2], 4
      %s17 = int_to_ptr.vmem [resolvable:$true] %s16
      %19 = dma.hbm_to_vmem [thread:$0]  %s0, 256, %s17, [#allocation3]
    $region5: #{tpu_custom_call.1} parent=1 // pred_fallthru
      _
    // Predicated region
    $region6: #{tpu_custom_call.1} parent=1 // pred_check
      _
    $region7: #{tpu_custom_call.1} parent=1 // pred_check_branch
      %21 = sbr.rel (0) target = $region9
    $region8: #{tpu_custom_call.1} parent=1 // pred_region
      %s23 = ssub.s32 128, 128
      %24 = vsyncadd [#allocation6], %s23
      %s26 = sshll.u32 [#allocation5], 4
      %s27 = int_to_ptr.vmem [resolvable:$true] %s26
      %29 = dma.hbm_to_vmem [thread:$0]  %s1, 128, %s27, [#allocation6]
    $region9: #{tpu_custom_call.1} parent=1 // pred_fallthru
      _
    // Predicated region
    $region10: #{tpu_custom_call.1} parent=1 // pred_check
      _
    $region11: #{tpu_custom_call.1} parent=1 // pred_check_branch
      %31 = sbr.rel (0) target = $region13
    $region12: #{tpu_custom_call.1} parent=1 // pred_region
      %32 = dma.done [#allocation3], 256
    $region13: #{tpu_custom_call.1} parent=1 // pred_fallthru
      _
    // Predicated region
    $region14: #{tpu_custom_call.1} parent=1 // pred_check
      _
    $region15: #{tpu_custom_call.1} parent=1 // pred_check_branch
      %34 = sbr.rel (0) target = $region17
    $region16: #{tpu_custom_call.1} parent=1 // pred_region
      %35 = dma.done [#allocation6], 128
    $region17: #{tpu_custom_call.1} parent=1 // pred_fallthru
      _
    %v36 = vld [vmem:[#allocation2] sm:$0xff]
    %v37 = vld [vmem:[#allocation2 + $0x8] sm:$0xff]
    %38 = vst [vmem:[#allocation7] sm:$0xff] %v36
    %39 = vst [vmem:[#allocation7 + $0x8] sm:$0xff] %v37
    %v40 = vld [vmem:[#allocation5] sm:$0xff]
    %41 = vst [vmem:[#allocation7 + $0x10] sm:$0xff] %v40
    // Predicated region
    $region18: #{tpu_custom_call.1} parent=1 // pred_check
      _
    $region19: #{tpu_custom_call.1} parent=1 // pred_check_branch
      %43 = sbr.rel (0) target = $region21
    $region20: #{tpu_custom_call.1} parent=1 // pred_region
      %s45 = ssub.s32 384, 384
      %46 = vsyncadd [#allocation4], %s45
      %s48 = sshll.u32 [#allocation7], 4
      %s49 = int_to_ptr.vmem [resolvable:$true] %s48
      %51 = dma.vmem_to_hbm [thread:$0]  %s49, 384, %s2, [#allocation4]
    $region21: #{tpu_custom_call.1} parent=1 // pred_fallthru
      _
    // Predicated region
    $region22: #{tpu_custom_call.1} parent=1 // pred_check
      _
    $region23: #{tpu_custom_call.1} parent=1 // pred_check_branch
      %53 = sbr.rel (0) target = $region25
    $region24: #{tpu_custom_call.1} parent=1 // pred_region
      %54 = dma.done [#allocation4], 384
    $region25: #{tpu_custom_call.1} parent=1 // pred_fallthru
      _
    %55 = vsyncpa [#allocation3], 1
    %56 = vsyncpa [#allocation6], 1
    %57 = vsyncpa [#allocation4], 1

</llo_original>
